<compile_context>
chip_gen: v6e
topology: v6e:2x2x1
jax: 0.10.0
libtpu: 0.0.40
codegen_flags: <defaults>
</compile_context>

<pallas_src>
import functools
import math

import jax
import jax.numpy as jnp
from jax.experimental import pallas as pl
from jax.experimental.pallas import tpu as pltpu

MASK_VALUE = -1e30  # large-negative instead of -inf (exp() underflows cleanly)


def _round_up(x, m):
    return ((x + m - 1) // m) * m


# ----------------------------------------------------------------------------
# Parameter prep: transpose / fuse / cast weights ONCE (not per forward call).
# ----------------------------------------------------------------------------
def prepare_params(params, *, nheads):
    dmodel = params["Wq"].shape[0]
    dk = dmodel // nheads
    scale = 1.0 / math.sqrt(dk)
    # Fold the 1/sqrt(dk) softmax scale into Wq: it multiplies both Q@K^T and
    # the relative-position bias Q@Krelpos, as in the PyTorch module
    # (softmax((QK + skew(Q@Krelpos)) / sqrt(dk) + mask)).
    wq_t = jnp.transpose(params["Wq"] * scale)            # (D, D)
    wk_t = jnp.transpose(params["Wk"])
    wv_t = jnp.transpose(params["Wv"])
    prepped = {
        "wq_t": wq_t.astype(jnp.bfloat16),
        "wk_t": wk_t.astype(jnp.bfloat16),
        "wv_t": wv_t.astype(jnp.bfloat16),
        "w_qkv_t": jnp.concatenate([wq_t, wk_t, wv_t], axis=1).astype(jnp.bfloat16),
        "wo_t": jnp.transpose(params["Wo"]).astype(jnp.bfloat16),
    }
    if "Krelpos" in params:
        prepped["krelpos"] = params["Krelpos"].astype(jnp.float32)   # (dk, S)
    return prepped


# ----------------------------------------------------------------------------
# Fused QKV projection: x @ [Wq|Wk|Wv]^T, three lane-dense (tm, D) outputs.
# ----------------------------------------------------------------------------
def _qkv_proj_kernel(x_ref, w_ref, q_ref, k_ref, v_ref):
    x = x_ref[...]                             # (tm, D) bf16
    w = w_ref[...]                             # (D, 3D) bf16, resident
    d = q_ref.shape[-1]
    q_ref[...] = jnp.dot(x, w[:, :d],
                         preferred_element_type=jnp.float32).astype(q_ref.dtype)
    k_ref[...] = jnp.dot(x, w[:, d:2 * d],
                         preferred_element_type=jnp.float32).astype(k_ref.dtype)
    v_ref[...] = jnp.dot(x, w[:, 2 * d:],
                         preferred_element_type=jnp.float32).astype(v_ref.dtype)


def qkv_projection(x, w_qkv_t, *, block_m=256):
    """x: (M, D) activations, w_qkv_t: (D, 3D) prepped bf16 fused weight."""
    M, D = x.shape
    xb = x.astype(jnp.bfloat16)
    tm = min(block_m, _round_up(M, 8))
    mp = _round_up(M, tm)
    if mp != M:
        xb = jnp.pad(xb, ((0, mp - M), (0, 0)))
    q, k, v = pl.pallas_call(
        _qkv_proj_kernel,
        out_shape=[jax.ShapeDtypeStruct((mp, D), jnp.bfloat16)] * 3,
        grid=(mp // tm,),
        in_specs=[
            pl.BlockSpec((tm, D), lambda i: (i, 0)),
            pl.BlockSpec((D, 3 * D), lambda i: (0, 0)),    # resident weight
        ],
        out_specs=[pl.BlockSpec((tm, D), lambda i: (i, 0))] * 3,
        compiler_params=pltpu.CompilerParams(dimension_semantics=("parallel",)),
    )(xb, w_qkv_t)
    return q[:M], k[:M], v[:M]


# ----------------------------------------------------------------------------
# Generic linear (used only when Q, K, V are distinct arrays).
# ----------------------------------------------------------------------------
def _linear_kernel(x_ref, w_ref, o_ref):
    o_ref[...] = jnp.dot(x_ref[...], w_ref[...],
                         preferred_element_type=jnp.float32).astype(o_ref.dtype)


def linear_no_bias(x, w_t, *, out_dtype=jnp.bfloat16, block_m=256):
    """x: (M, K), w_t: (K, N) pre-transposed bf16 weight.  Returns (M, N)."""
    M, K = x.shape
    N = w_t.shape[1]
    xb = x.astype(jnp.bfloat16)
    tm = min(block_m, _round_up(M, 8))
    mp = _round_up(M, tm)
    if mp != M:
        xb = jnp.pad(xb, ((0, mp - M), (0, 0)))
    out = pl.pallas_call(
        _linear_kernel,
        out_shape=jax.ShapeDtypeStruct((mp, N), out_dtype),
        grid=(mp // tm,),
        in_specs=[pl.BlockSpec((tm, K), lambda i: (i, 0)),
                  pl.BlockSpec((K, N), lambda i: (0, 0))],
        out_specs=pl.BlockSpec((tm, N), lambda i: (i, 0)),
        compiler_params=pltpu.CompilerParams(dimension_semantics=("parallel",)),
    )(xb, w_t)
    return out[:M]


# ----------------------------------------------------------------------------
# Fused causal attention + Wo kernel: grid = (batch, q-tile, kv-tile).
# Online softmax (flash-style) with f32 scratch; heads looped inside so both
# the accumulator and the final store are dmodel-wide (128-lane-dense) slabs.
# ----------------------------------------------------------------------------
def _attention_kernel(*refs, nheads, relpos):
    if relpos:
        (q_ref, k_ref, v_ref, bias_ref, wo_ref, o_ref,
         m_ref, l_ref, acc_ref) = refs
    else:
        q_ref, k_ref, v_ref, wo_ref, o_ref, m_ref, l_ref, acc_ref = refs
        bias_ref = None

    tq, d = q_ref.shape
    tk = k_ref.shape[0]
    dk = d // nheads

    qi = pl.program_id(1)
    kvi = pl.program_id(2)
    q_start = qi * tq
    kv_start = kvi * tk
    q_end = q_start + tq - 1                       # last query row of this tile

    # ---- init online-softmax state at the first kv step ----------------------
    @pl.when(kvi == 0)
    def _():
        m_ref[...] = jnp.full(m_ref.shape, -jnp.inf, dtype=jnp.float32)
        l_ref[...] = jnp.zeros(l_ref.shape, dtype=jnp.float32)
        acc_ref[...] = jnp.zeros(acc_ref.shape, dtype=jnp.float32)

    # ---- one online-softmax update for this kv tile ---------------------------
    def process(masked):
        q = q_ref[...]                             # (tq, D) bf16 (pre-scaled)
        k = k_ref[...]                             # (tk, D) bf16
        v = v_ref[...]                             # (tk, D) bf16
        if masked:                                 # built once, not per head
            row = q_start + jax.lax.broadcasted_iota(jnp.int32, (tq, tk), 0)
            col = kv_start + jax.lax.broadcasted_iota(jnp.int32, (tq, tk), 1)
            mask_add = jnp.where(col <= row, 0.0, MASK_VALUE).astype(jnp.float32)
        for h in range(nheads):
            lo = h * dk
            qh = q[:, lo:lo + dk]
            kh = k[:, lo:lo + dk]
            vh = v[:, lo:lo + dk]
            s = jax.lax.dot_general(qh, kh, (((1,), (1,)), ((), ())),
                                    preferred_element_type=jnp.float32)
            if bias_ref is not None:
                s = s + bias_ref[h].astype(jnp.float32)   # relpos bias (scaled)
            if masked:
                s = s + mask_add
            m_prev = m_ref[h]                                         # (tq, 1)
            m_new = jnp.maximum(m_prev, jnp.max(s, axis=-1, keepdims=True))
            alpha = jnp.exp(m_prev - m_new)
            p = jnp.exp(s - m_new)
            # TODO(synk): train-mode dropout on `p` omitted (matches eval()).
            l_ref[h] = alpha * l_ref[h] + jnp.sum(p, axis=-1, keepdims=True)
            acc_ref[:, lo:lo + dk] = (
                alpha * acc_ref[:, lo:lo + dk]
                + jnp.dot(p.astype(v.dtype), vh,
                          preferred_element_type=jnp.float32))
            m_ref[h] = m_new

    active = kv_start <= q_end                         # tile not fully masked
    fully_visible = (kv_start + tk - 1) <= q_start     # no causal mask needed

    @pl.when(jnp.logical_and(active, fully_visible))
    def _():
        process(masked=False)

    @pl.when(jnp.logical_and(active, jnp.logical_not(fully_visible)))
    def _():
        process(masked=True)

    # ---- epilogue: normalize, fused Wo, one lane-dense (tq, D) store ----------
    @pl.when(kvi == pl.num_programs(2) - 1)
    def _():
        for h in range(nheads):
            lo = h * dk
            inv = pl.reciprocal(l_ref[h], approx=True)    # EUP slot, ~free
            acc_ref[:, lo:lo + dk] = acc_ref[:, lo:lo + dk] * inv
        y = acc_ref[...].astype(jnp.bfloat16)             # (tq, D)
        o_ref[...] = jnp.dot(y, wo_ref[...],
                             preferred_element_type=jnp.float32).astype(o_ref.dtype)


# ----------------------------------------------------------------------------
# MultiHeadAttention forward (matches the PyTorch module in eval mode)
# ----------------------------------------------------------------------------
def multi_head_attention(prepped, Q, K, V, *, nheads, abspos,
                         block_q=128, block_k=128):
    """prepped: output of prepare_params().  Q, K, V: (B, S, D) f32."""
    B, S, D = Q.shape
    assert D % nheads == 0
    dk = D // nheads
    relpos = not abspos

    # ---- input projections (bf16 MXU operands, f32 accumulate) ---------------
    if Q is K and K is V:      # self-attention: one fused (D, 3D) matmul call
        q, k, v = qkv_projection(Q.reshape(B * S, D), prepped["w_qkv_t"])
    else:
        q = linear_no_bias(Q.reshape(B * S, D), prepped["wq_t"])
        k = linear_no_bias(K.reshape(B * S, D), prepped["wk_t"])
        v = linear_no_bias(V.reshape(B * S, D), prepped["wv_t"])
    q = q.reshape(B, S, D)
    k = k.reshape(B, S, D)
    v = v.reshape(B, S, D)

    # ---- tiling: q padded to a multiple of block_q; kv tiled over S -----------
    tq = min(block_q, _round_up(S, 8))
    sq = _round_up(S, tq)
    num_q = sq // tq
    tk = block_k if S % block_k == 0 else S
    num_kv = S // tk

    # ---- optional relative-position bias (PyTorch "skew" trick) ---------------
    # Built outside the kernel (it is q-dependent), cast to bf16 and streamed
    # per (q-tile, kv-tile) block so the per-step VMEM block is (H, tq, tk).
    # TODO(synk): move the skew in-kernel (q_h @ Krelpos + strided pltpu.roll)
    # to remove the O(B*H*S^2) HBM round trip entirely.
    bias = None
    if relpos:
        qh = q.astype(jnp.float32).reshape(B, S, nheads, dk).transpose(0, 2, 1, 3)
        qp = jnp.einsum("bhsd,dt->bhst", qh, prepped["krelpos"])      # (B,H,S,S)
        qp = jnp.concatenate(
            [jnp.zeros((B, nheads, S, 1), jnp.float32), qp], axis=-1)
        bias = qp.reshape(B, nheads, S + 1, S)[:, :, 1:, :]           # skew
        if sq != S:
            bias = jnp.pad(bias, ((0, 0), (0, 0), (0, sq - S), (0, 0)))
        bias = bias.astype(jnp.bfloat16)

    if sq != S:
        q = jnp.pad(q, ((0, 0), (0, sq - S), (0, 0)))

    # kv index map is clamped to the last kv tile a q tile can see, so blocks
    # fully above the causal diagonal are neither re-fetched nor computed.
    def q_index(b, qi, kv):
        return (b, qi, 0)

    def kv_index(b, qi, kv):
        last_needed = (qi * tq + tq - 1) // tk
        return (b, jnp.minimum(kv, last_needed), 0)

    def bias_index(b, qi, kv):
        last_needed = (qi * tq + tq - 1) // tk
        return (b, 0, qi, jnp.minimum(kv, last_needed))

    def wo_index(b, qi, kv):
        return (0, 0)

    in_specs = [
        pl.BlockSpec((None, tq, D), q_index),
        pl.BlockSpec((None, tk, D), kv_index),
        pl.BlockSpec((None, tk, D), kv_index),
    ]
    args = [q, k, v]
    if relpos:
        in_specs.append(pl.BlockSpec((None, nheads, tq, tk), bias_index))
        args.append(bias)
    in_specs.append(pl.BlockSpec((D, D), wo_index))        # resident Wo^T
    args.append(prepped["wo_t"])

    out = pl.pallas_call(
        functools.partial(_attention_kernel, nheads=nheads, relpos=relpos),
        out_shape=jax.ShapeDtypeStruct((B, sq, D), jnp.float32),
        grid=(B, num_q, num_kv),
        in_specs=in_specs,
        out_specs=pl.BlockSpec((None, tq, D), q_index),
        scratch_shapes=[
            pltpu.VMEM((nheads, tq, 1), jnp.float32),       # running max m
            pltpu.VMEM((nheads, tq, 1), jnp.float32),       # running sum l
            pltpu.VMEM((tq, D), jnp.float32),               # output accumulator
        ],
        compiler_params=pltpu.CompilerParams(
            dimension_semantics=("parallel", "parallel", "arbitrary")),
    )(*args)

    return out[:, :S]


# ----------------------------------------------------------------------------
# Pure-JAX reference mirroring the PyTorch forward (eval mode) for verification
# ----------------------------------------------------------------------------
def mha_reference(params, Q, K, V, *, nheads, abspos):
    B, S, D = Q.shape
    dk = D // nheads
    relpos = not abspos

    def lin(x, w):                       # nn.Linear(bias=False): x @ w.T
        return jnp.einsum("bsd,od->bso", x, w)

    def trans(x):                        # trans_
        return x.reshape(B, S, nheads, dk).transpose(0, 2, 1, 3).reshape(B * nheads, S, dk)

    q = trans(lin(Q, params["Wq"]))
    k = trans(lin(K, params["Wk"]))
    v = trans(lin(V, params["Wv"]))

    qk = jnp.einsum("bqd,bkd->bqk", q, k)
    if relpos:
        qp = jnp.einsum("bqd,dk->bqk", q, params["Krelpos"])
        qp = jnp.concatenate([jnp.zeros((B * nheads, S, 1), qp.dtype), qp], axis=2)
        qk = qk + qp.reshape(B * nheads, S + 1, S)[:, 1:, :]
    mask = jnp.where(jnp.tril(jnp.ones((S, S))) == 1.0, 0.0, -jnp.inf)
    a = jax.nn.softmax(qk / math.sqrt(dk) + mask[None], axis=2)
    y = jnp.einsum("bqk,bkd->bqd", a, v)
    y = y.reshape(B, nheads, S, dk).transpose(0, 2, 1, 3).reshape(B, S, D)
    return jnp.einsum("bsd,od->bso", y, params["Wo"])


if __name__ == "__main__":
    B, SEQ, DMODEL, NHEADS = 2, 128, 128, 4     # sizeSeq=128, dmodel=128, dk=32
    dk = DMODEL // NHEADS

    key = jax.random.PRNGKey(0)
    kq, kk, kv, ko, kr, kx = jax.random.split(key, 6)
    stdv = 1.0 / math.sqrt(DMODEL)
    params = {
        "Wq": jax.random.uniform(kq, (DMODEL, DMODEL), jnp.float32, -stdv, stdv),
        "Wk": jax.random.uniform(kk, (DMODEL, DMODEL), jnp.float32, -stdv, stdv),
        "Wv": jax.random.uniform(kv, (DMODEL, DMODEL), jnp.float32, -stdv, stdv),
        "Wo": jax.random.uniform(ko, (DMODEL, DMODEL), jnp.float32, -stdv, stdv),
        # Krelpos ~ U(-1/sqrt(dk), 1/sqrt(dk)), shape (dk, sizeSeq) as in initmat_
        "Krelpos": jax.random.uniform(
            kr, (dk, SEQ), jnp.float32, -1.0 / math.sqrt(dk), 1.0 / math.sqrt(dk)),
    }
    x = jax.random.normal(kx, (B, SEQ, DMODEL), jnp.float32)

    # Weight prep (transpose / fuse / bf16 cast) happens ONCE, outside the forward.
    prepped = prepare_params(params, nheads=NHEADS)

    # abspos=True  -> plain causal attention
    out_abs = jax.block_until_ready(
        multi_head_attention(prepped, x, x, x, nheads=NHEADS, abspos=True))
    ref_abs = jax.block_until_ready(
        mha_reference(params, x, x, x, nheads=NHEADS, abspos=True))
    # abspos=False -> relative-position bias path
    out_rel = jax.block_until_ready(
        multi_head_attention(prepped, x, x, x, nheads=NHEADS, abspos=False))
    ref_rel = jax.block_until_ready(
        mha_reference(params, x, x, x, nheads=NHEADS, abspos=False))

    assert out_abs.shape == (B, SEQ, DMODEL), out_abs.shape
    err_abs = float(jnp.max(jnp.abs(out_abs - ref_abs)))
    err_rel = float(jnp.max(jnp.abs(out_rel - ref_rel)))
    assert jnp.allclose(out_abs, ref_abs, atol=2e-2, rtol=2e-2), err_abs
    assert jnp.allclose(out_rel, ref_rel, atol=2e-2, rtol=2e-2), err_rel
    print("KERNEL_OK")
</pallas_src>

<mosaic_0001>
module attributes {stable_mosaic.version = 11 : i64} {
  func.func @_qkv_proj_kernel(%arg0: i32, %arg1: memref<256x128xbf16, #tpu.memory_space<vmem>>, %arg2: memref<128x384xbf16, #tpu.memory_space<vmem>>, %arg3: memref<256x128xbf16, #tpu.memory_space<vmem>>, %arg4: memref<256x128xbf16, #tpu.memory_space<vmem>>, %arg5: memref<256x128xbf16, #tpu.memory_space<vmem>>) attributes {dimension_semantics = [#tpu.dimension_semantics<parallel>], iteration_bounds = array<i64: 1>, scalar_prefetch = 0 : i64, scratch_operands = 0 : i64, tpu.core_type = #tpu.core_type<tc>, window_params = [{transform_indices = @transform_0, window_bounds = array<i64: 256, 128>}, {pipeline_mode = #tpu.pipeline_mode<synchronous>, transform_indices = @transform_1, window_bounds = array<i64: 128, 384>}, {transform_indices = @transform_2, window_bounds = array<i64: 256, 128>}, {transform_indices = @transform_3, window_bounds = array<i64: 256, 128>}, {transform_indices = @transform_4, window_bounds = array<i64: 256, 128>}]} {
    %c0 = arith.constant 0 : index
    %c0_0 = arith.constant 0 : index
    %0 = vector.load %arg1[%c0, %c0_0] : memref<256x128xbf16, #tpu.memory_space<vmem>>, vector<256x128xbf16>
    %c0_1 = arith.constant 0 : index
    %c0_2 = arith.constant 0 : index
    %1 = vector.load %arg2[%c0_1, %c0_2] : memref<128x384xbf16, #tpu.memory_space<vmem>>, vector<128x384xbf16>
    %2 = vector.extract_strided_slice %1 {offsets = [0, 0], sizes = [128, 128], strides = [1, 1]} : vector<128x384xbf16> to vector<128x128xbf16>
    %cst = arith.constant dense<0.000000e+00> : vector<256x128xf32>
    %3 = tpu.matmul %0, %2, %cst {dimension_numbers = #tpu.dot_dimension_numbers<[1], [0], [0], [1], [0, 0, 1, 1], [], []>} : vector<256x128xbf16>, vector<128x128xbf16>, vector<256x128xf32> -> vector<256x128xf32>
    %4 = arith.truncf %3 : vector<256x128xf32> to vector<256x128xbf16>
    %c0_3 = arith.constant 0 : index
    %c0_4 = arith.constant 0 : index
    %5 = vector.load %arg3[%c0_3, %c0_4] : memref<256x128xbf16, #tpu.memory_space<vmem>>, vector<256x128xbf16>
    tpu.vector_store %arg3[%c0_3, %c0_4], %4 {strides = array<i32>} : memref<256x128xbf16, #tpu.memory_space<vmem>>, vector<256x128xbf16>,
    %6 = vector.extract_strided_slice %1 {offsets = [0, 128], sizes = [128, 128], strides = [1, 1]} : vector<128x384xbf16> to vector<128x128xbf16>
    %cst_5 = arith.constant dense<0.000000e+00> : vector<256x128xf32>
    %7 = tpu.matmul %0, %6, %cst_5 {dimension_numbers = #tpu.dot_dimension_numbers<[1], [0], [0], [1], [0, 0, 1, 1], [], []>} : vector<256x128xbf16>, vector<128x128xbf16>, vector<256x128xf32> -> vector<256x128xf32>
    %8 = arith.truncf %7 : vector<256x128xf32> to vector<256x128xbf16>
    %c0_6 = arith.constant 0 : index
    %c0_7 = arith.constant 0 : index
    %9 = vector.load %arg4[%c0_6, %c0_7] : memref<256x128xbf16, #tpu.memory_space<vmem>>, vector<256x128xbf16>
    tpu.vector_store %arg4[%c0_6, %c0_7], %8 {strides = array<i32>} : memref<256x128xbf16, #tpu.memory_space<vmem>>, vector<256x128xbf16>,
    %10 = vector.extract_strided_slice %1 {offsets = [0, 256], sizes = [128, 128], strides = [1, 1]} : vector<128x384xbf16> to vector<128x128xbf16>
    %cst_8 = arith.constant dense<0.000000e+00> : vector<256x128xf32>
    %11 = tpu.matmul %0, %10, %cst_8 {dimension_numbers = #tpu.dot_dimension_numbers<[1], [0], [0], [1], [0, 0, 1, 1], [], []>} : vector<256x128xbf16>, vector<128x128xbf16>, vector<256x128xf32> -> vector<256x128xf32>
    %12 = arith.truncf %11 : vector<256x128xf32> to vector<256x128xbf16>
    %c0_9 = arith.constant 0 : index
    %c0_10 = arith.constant 0 : index
    %13 = vector.load %arg5[%c0_9, %c0_10] : memref<256x128xbf16, #tpu.memory_space<vmem>>, vector<256x128xbf16>
    tpu.vector_store %arg5[%c0_9, %c0_10], %12 {strides = array<i32>} : memref<256x128xbf16, #tpu.memory_space<vmem>>, vector<256x128xbf16>,
    return
  }
  func.func @transform_0(%arg0: i32) -> (i32, i32) {
    %c0_i32 = arith.constant 0 : i32
    %c0_i32_0 = arith.constant 0 : i32
    return %arg0, %c0_i32 : i32, i32
  }
  func.func @transform_1(%arg0: i32) -> (i32, i32) {
    %c0_i32 = arith.constant 0 : i32
    %c0_i32_0 = arith.constant 0 : i32
    %c0_i32_1 = arith.constant 0 : i32
    return %c0_i32, %c0_i32_0 : i32, i32
  }
  func.func @transform_2(%arg0: i32) -> (i32, i32) {
    %c0_i32 = arith.constant 0 : i32
    %c0_i32_0 = arith.constant 0 : i32
    return %arg0, %c0_i32 : i32, i32
  }
  func.func @transform_3(%arg0: i32) -> (i32, i32) {
    %c0_i32 = arith.constant 0 : i32
    %c0_i32_0 = arith.constant 0 : i32
    return %arg0, %c0_i32 : i32, i32
  }
  func.func @transform_4(%arg0: i32) -> (i32, i32) {
    %c0_i32 = arith.constant 0 : i32
    %c0_i32_0 = arith.constant 0 : i32
    return %arg0, %c0_i32 : i32, i32
  }
}

</mosaic_0001>

<llo_original>
// kernel: tpu_custom_call.1
$region0: #{tpu_custom_call.1}
  #allocation0 [shape = 'u32[]', space=smem, size = 0x4, offset = 0x4, fixed_abs, tag = 'smem constant byte address 0x4 - core index']
  #allocation1 [shape = 'u32[144,128]{1,0:T(1,128)}', space=vmem, size = 0x12000, scoped, tag = 'internal scratch']
  %s0 = inlined_call_operand.hbm [shape: bf16[256,128], index: 0, kind: input, shape index: {}]
  %s1 = inlined_call_operand.hbm [shape: bf16[128,384], index: 1, kind: input, shape index: {}]
  %s2 = inlined_call_operand.hbm [shape: bf16[256,128], index: 2, kind: output, shape index: {0}]
  %s3 = inlined_call_operand.hbm [shape: bf16[256,128], index: 3, kind: output, shape index: {1}]
  %s4 = inlined_call_operand.hbm [shape: bf16[256,128], index: 4, kind: output, shape index: {2}]
  %5 = xla_tuple %s2, %s3, %s4
  %s6 = sld [smem:[#allocation0]]
  $region42: #{tpu_custom_call.1} parent=0
    _
  %s8 = ssub.s32 1, %s6
  %s9 = scalar_select 0, %s8, %s6
  $region1: #{tpu_custom_call.1} parent=0
    #allocation2 [shape = 'u8[65536]{0}', space=vmem, size = 0x10000, scoped, tag = 'input window, operand 0, single buffered']
    #allocation3 [shape = 's32[1]{0}', space=sflag, size = 0x4, scoped, tag = 'scoped memory for tpu_custom_call.1']
    #allocation4 [shape = 's32[1]{0}', space=sflag, size = 0x4, scoped, tag = 'scoped memory for tpu_custom_call.1']
    #allocation5 [shape = 'u8[98304]{0}', space=vmem, size = 0x18000, scoped, tag = 'input window, operand 1, single buffered']
    #allocation6 [shape = 's32[1]{0}', space=sflag, size = 0x4, scoped, tag = 'scoped memory for tpu_custom_call.1']
    #allocation7 [shape = 'u8[65536]{0}', space=vmem, size = 0x10000, scoped, tag = 'output window, operand 0, single buffered']
    #allocation8 [shape = 'u8[65536]{0}', space=vmem, size = 0x10000, scoped, tag = 'output window, operand 1, single buffered']
    #allocation9 [shape = 's32[1]{0}', space=sflag, size = 0x4, scoped, tag = 'scoped memory for tpu_custom_call.1']
    #allocation10 [shape = 'u8[65536]{0}', space=vmem, size = 0x10000, scoped, tag = 'output window, operand 2, single buffered']
    %10 = vsyncpa [#allocation3], 0
    %11 = vsyncpa [#allocation6], 0
    %12 = vsyncpa [#allocation4], 0
    %13 = vsyncpa [#allocation9], 0
    // Predicated region
    $region2: #{tpu_custom_call.1} parent=1 // pred_check
      _
    $region3: #{tpu_custom_call.1} parent=1 // pred_check_branch
      %15 = sbr.rel (0) target = $region5
    $region4: #{tpu_custom_call.1} parent=1 // pred_region
      %s17 = ssub.s32 2048, 2048
      %18 = vsyncadd [#allocation3], %s17
      %s19 = sshll.u32 [#allocation2], 4
      %s20 = int_to_ptr.vmem [resolvable:$true] %s19
      %25 = dma.hbm_to_vmem [thread:$0]  %s0, 2048, %s20, [#allocation3], 64, 64, 4
    $region5: #{tpu_custom_call.1} parent=1 // pred_fallthru
      _
    // Predicated region
    $region6: #{tpu_custom_call.1} parent=1 // pred_check
      _
    $region7: #{tpu_custom_call.1} parent=1 // pred_check_branch
      %27 = sbr.rel (0) target = $region9
    $region8: #{tpu_custom_call.1} parent=1 // pred_region
      %s29 = ssub.s32 3072, 3072
      %30 = vsyncadd [#allocation6], %s29
      %s31 = sshll.u32 [#allocation5], 4
      %s32 = int_to_ptr.vmem [resolvable:$true] %s31
      %37 = dma.hbm_to_vmem [thread:$0]  %s1, 3072, %s32, [#allocation6], 192, 192, 12
    $region9: #{tpu_custom_call.1} parent=1 // pred_fallthru
      _
    // Predicated region
    $region10: #{tpu_custom_call.1} parent=1 // pred_check
      _
    $region11: #{tpu_custom_call.1} parent=1 // pred_check_branch
      %39 = sbr.rel (0) target = $region13
    $region12: #{tpu_custom_call.1} parent=1 // pred_region
      %40 = dma.done [#allocation3], 2048
    $region13: #{tpu_custom_call.1} parent=1 // pred_fallthru
      _
    // Predicated region
    $region14: #{tpu_custom_call.1} parent=1 // pred_check
      _
    $region15: #{tpu_custom_call.1} parent=1 // pred_check_branch
      %42 = sbr.rel (0) target = $region17
    $region16: #{tpu_custom_call.1} parent=1 // pred_region
      %43 = dma.done [#allocation6], 3072
    $region17: #{tpu_custom_call.1} parent=1 // pred_fallthru
      _
    %v45 = vld [vmem:[#allocation2] sm:$0xf]
    %v46 = vld [vmem:[#allocation2 + $0x4] sm:$0xf]
    %v47 = vld [vmem:[#allocation2 + $0x8] sm:$0xf]
    %v48 = vld [vmem:[#allocation2 + $0xc] sm:$0xf]
    %v49 = vld [vmem:[#allocation2 + $0x10] sm:$0xf]
    %v50 = vld [vmem:[#allocation2 + $0x14] sm:$0xf]
    %v51 = vld [vmem:[#allocation2 + $0x18] sm:$0xf]
    %v52 = vld [vmem:[#allocation2 + $0x1c] sm:$0xf]
    %v53 = vld [vmem:[#allocation2 + $0x20] sm:$0xf]
    %v54 = vld [vmem:[#allocation2 + $0x24] sm:$0xf]
    %v55 = vld [vmem:[#allocation2 + $0x28] sm:$0xf]
    %v56 = vld [vmem:[#allocation2 + $0x2c] sm:$0xf]
    %v57 = vld [vmem:[#allocation2 + $0x30] sm:$0xf]
    %v58 = vld [vmem:[#allocation2 + $0x34] sm:$0xf]
    %v59 = vld [vmem:[#allocation2 + $0x38] sm:$0xf]
    %v60 = vld [vmem:[#allocation2 + $0x3c] sm:$0xf]
    %v61 = vld [vmem:[#allocation2 + $0x40] sm:$0xf]
    %v62 = vld [vmem:[#allocation2 + $0x44] sm:$0xf]
    %v63 = vld [vmem:[#allocation2 + $0x48] sm:$0xf]
    %v64 = vld [vmem:[#allocation2 + $0x4c] sm:$0xf]
    %v65 = vld [vmem:[#allocation2 + $0x50] sm:$0xf]
    %v66 = vld [vmem:[#allocation2 + $0x54] sm:$0xf]
    %v67 = vld [vmem:[#allocation2 + $0x58] sm:$0xf]
    %v68 = vld [vmem:[#allocation2 + $0x5c] sm:$0xf]
    %v69 = vld [vmem:[#allocation2 + $0x60] sm:$0xf]
    %v70 = vld [vmem:[#allocation2 + $0x64] sm:$0xf]
    %v71 = vld [vmem:[#allocation2 + $0x68] sm:$0xf]
    %v72 = vld [vmem:[#allocation2 + $0x6c] sm:$0xf]
    %v73 = vld [vmem:[#allocation2 + $0x70] sm:$0xf]
    %v74 = vld [vmem:[#allocation2 + $0x74] sm:$0xf]
    %v75 = vld [vmem:[#allocation2 + $0x78] sm:$0xf]
    %v76 = vld [vmem:[#allocation2 + $0x7c] sm:$0xf]
    %v77 = vld [vmem:[#allocation5] sm:$0xff]
    %v78 = vld [vmem:[#allocation5 + $0x8] sm:$0xf]
    %v79 = vld [vmem:[#allocation5 + $0xc] sm:$0xff]
    %v80 = vld [vmem:[#allocation5 + $0x14] sm:$0xf]
    %v81 = vld [vmem:[#allocation5 + $0x18] sm:$0xff]
    %v82 = vld [vmem:[#allocation5 + $0x20] sm:$0xf]
    %v83 = vld [vmem:[#allocation5 + $0x24] sm:$0xff]
    %v84 = vld [vmem:[#allocation5 + $0x2c] sm:$0xf]
    %v85 = vld [vmem:[#allocation5 + $0x30] sm:$0xff]
    %v86 = vld [vmem:[#allocation5 + $0x38] sm:$0xf]
    %v87 = vld [vmem:[#allocation5 + $0x3c] sm:$0xff]
    %v88 = vld [vmem:[#allocation5 + $0x44] sm:$0xf]
    %v89 = vld [vmem:[#allocation5 + $0x48] sm:$0xff]
    %v90 = vld [vmem:[#allocation5 + $0x50] sm:$0xf]
    %v91 = vld [vmem:[#allocation5 + $0x54] sm:$0xff]
    %v92 = vld [vmem:[#allocation5 + $0x5c] sm:$0xf]
    %v93 = vld [vmem:[#allocation5 + $0x60] sm:$0xff]
    %v94 = vld [vmem:[#allocation5 + $0x68] sm:$0xf]
    %v95 = vld [vmem:[#allocation5 + $0x6c] sm:$0xff]
    %v96 = vld [vmem:[#allocation5 + $0x74] sm:$0xf]
    %v97 = vld [vmem:[#allocation5 + $0x78] sm:$0xff]
    %v98 = vld [vmem:[#allocation5 + $0x80] sm:$0xf]
    %v99 = vld [vmem:[#allocation5 + $0x84] sm:$0xff]
    %v100 = vld [vmem:[#allocation5 + $0x8c] sm:$0xf]
    %v101 = vld [vmem:[#allocation5 + $0x90] sm:$0xff]
    %v102 = vld [vmem:[#allocation5 + $0x98] sm:$0xf]
    %v103 = vld [vmem:[#allocation5 + $0x9c] sm:$0xff]
    %v104 = vld [vmem:[#allocation5 + $0xa4] sm:$0xf]
    %v105 = vld [vmem:[#allocation5 + $0xa8] sm:$0xff]
    %v106 = vld [vmem:[#allocation5 + $0xb0] sm:$0xf]
    %v107 = vld [vmem:[#allocation5 + $0xb4] sm:$0xff]
    %v108 = vld [vmem:[#allocation5 + $0xbc] sm:$0xf]
    %v141 = vunpack.c.l.b16 %v45
    %v142 = vunpack.c.l.b16 %v46
    %v143 = vunpack.c.l.b16 %v47
    %v144 = vunpack.c.l.b16 %v48
    %v145 = vunpack.c.l.b16 %v49
    %v146 = vunpack.c.l.b16 %v50
    %v147 = vunpack.c.l.b16 %v51
    %v148 = vunpack.c.l.b16 %v52
    %v149 = vunpack.c.l.b16 %v53
    %v150 = vunpack.c.l.b16 %v54
    %v151 = vunpack.c.l.b16 %v55
    %v152 = vunpack.c.l.b16 %v56
    %v153 = vunpack.c.l.b16 %v57
    %v154 = vunpack.c.l.b16 %v58
    %v155 = vunpack.c.l.b16 %v59
    %v156 = vunpack.c.l.b16 %v60
    %v157 = vunpack.c.l.b16 %v61
    %v158 = vunpack.c.l.b16 %v62
    %v159 = vunpack.c.l.b16 %v63
    %v160 = vunpack.c.l.b16 %v64
    %v161 = vunpack.c.l.b16 %v65
    %v162 = vunpack.c.l.b16 %v66
    %v163 = vunpack.c.l.b16 %v67
    %v164 = vunpack.c.l.b16 %v68
    %v165 = vunpack.c.l.b16 %v69
    %v166 = vunpack.c.l.b16 %v70
    %v167 = vunpack.c.l.b16 %v71
    %v168 = vunpack.c.l.b16 %v72
    %v169 = vunpack.c.l.b16 %v73
    %v170 = vunpack.c.l.b16 %v74
    %v171 = vunpack.c.l.b16 %v75
    %v172 = vunpack.c.l.b16 %v76
    %v173 = vpack.c.b16 %v142, %v141
    %v174 = vpack.c.b16 %v144, %v143
    %v175 = vpack.c.b16 %v146, %v145
    %v176 = vpack.c.b16 %v148, %v147
    %v177 = vpack.c.b16 %v150, %v149
    %v178 = vpack.c.b16 %v152, %v151
    %v179 = vpack.c.b16 %v154, %v153
    %v180 = vpack.c.b16 %v156, %v155
    %v181 = vpack.c.b16 %v158, %v157
    %v182 = vpack.c.b16 %v160, %v159
    %v183 = vpack.c.b16 %v162, %v161
    %v184 = vpack.c.b16 %v164, %v163
    %v185 = vpack.c.b16 %v166, %v165
    %v186 = vpack.c.b16 %v168, %v167
    %v187 = vpack.c.b16 %v170, %v169
    %v188 = vpack.c.b16 %v172, %v171
    %v221 = vunpack.c.l.b16 %v77
    %v222 = vunpack.c.l.b16 %v79
    %v223 = vunpack.c.l.b16 %v81
    %v224 = vunpack.c.l.b16 %v83
    %v225 = vunpack.c.l.b16 %v85
    %v226 = vunpack.c.l.b16 %v87
    %v227 = vunpack.c.l.b16 %v89
    %v228 = vunpack.c.l.b16 %v91
    %v229 = vunpack.c.l.b16 %v93
    %v230 = vunpack.c.l.b16 %v95
    %v231 = vunpack.c.l.b16 %v97
    %v232 = vunpack.c.l.b16 %v99
    %v233 = vunpack.c.l.b16 %v101
    %v234 = vunpack.c.l.b16 %v103
    %v235 = vunpack.c.l.b16 %v105
    %v236 = vunpack.c.l.b16 %v107
    %v237 = vpack.c.b16 %v222, %v221
    %v238 = vpack.c.b16 %v224, %v223
    %v239 = vpack.c.b16 %v226, %v225
    %v240 = vpack.c.b16 %v228, %v227
    %v241 = vpack.c.b16 %v230, %v229
    %v242 = vpack.c.b16 %v232, %v231
    %v243 = vpack.c.b16 %v234, %v233
    %v244 = vpack.c.b16 %v236, %v235
    %253 = vmatprep.subr.bf16.mxu0 0
    %254 = vmatpush1.bf16.msra.mxu0 %v244
    %255 = vmatprep.subr.bf16.mxu0 0
    %256 = vmatpush1.bf16.msra.mxu0 %v243
    %257 = vmatprep.subr.bf16.mxu0 0
    %258 = vmatpush1.bf16.msra.mxu0 %v242
    %259 = vmatprep.subr.bf16.mxu0 0
    %260 = vmatpush1.bf16.msra.mxu0 %v241
    %261 = vmatprep.subr.bf16.mxu0 0
    %262 = vmatpush1.bf16.msra.mxu0 %v240
    %263 = vmatprep.subr.bf16.mxu0 0
    %264 = vmatpush1.bf16.msra.mxu0 %v239
    %265 = vmatprep.subr.bf16.mxu0 0
    %266 = vmatpush1.bf16.msra.mxu0 %v238
    %267 = vmatprep.subr.bf16.mxu0 0
    %268 = vmatpush1.bf16.msra.mxu0 %v237
    %269 = vmatprep.subr.bf16.mxu0 0
    %270 = vmatpush2.bf16.msra.mxu0 0
    %271 = vmatprep.subr.bf16.mxu0 0
    %272 = vmatpush2.bf16.msra.mxu0 0
    %273 = vmatprep.subr.bf16.mxu0 0
    %274 = vmatpush2.bf16.msra.mxu0 0
    %275 = vmatprep.subr.bf16.mxu0 0
    %276 = vmatpush2.bf16.msra.mxu0 0
    %277 = vmatprep.subr.bf16.mxu0 0
    %278 = vmatpush2.bf16.msra.mxu0 0
    %279 = vmatprep.subr.bf16.mxu0 0
    %280 = vmatpush2.bf16.msra.mxu0 0
    %281 = vmatprep.subr.bf16.mxu0 0
    %282 = vmatpush2.bf16.msra.mxu0 0
    %283 = vmatprep.subr.bf16.mxu0 0
    %284 = vmatpush2.bf16.msra.mxu0 0
    %285 = vmatprep.mubr.bf16.mxu0 0
    %286 = vmatmul.mubr.bf16.gmra.mxu0 %v173
    %v287 = vpop.f32.mrf.mxu0
    %v288 = vadd.f32 0.0, %v287
    %v289 = vpop.f32.mrf.mxu0
    %v290 = vpop.f32.mrf.mxu0
    %v291 = vadd.f32 0.0, %v290
    %v292 = vpop.f32.mrf.mxu0
    %293 = vmatprep.mubr.bf16.mxu0 0
    %294 = vmatmul.mubr.bf16.gmra.mxu0 %v174
    %v295 = vpop.f32.mrf.mxu0
    %v296 = vadd.f32 0.0, %v295
    %v297 = vpop.f32.mrf.mxu0
    %v298 = vpop.f32.mrf.mxu0
    %v299 = vadd.f32 0.0, %v298
    %v300 = vpop.f32.mrf.mxu0
    %301 = vmatprep.mubr.bf16.mxu0 0
    %302 = vmatmul.mubr.bf16.gmra.mxu0 %v175
    %v303 = vpop.f32.mrf.mxu0
    %v304 = vadd.f32 0.0, %v303
    %v305 = vpop.f32.mrf.mxu0
    %v306 = vpop.f32.mrf.mxu0
    %v307 = vadd.f32 0.0, %v306
    %v308 = vpop.f32.mrf.mxu0
    %309 = vmatprep.mubr.bf16.mxu0 0
    %310 = vmatmul.mubr.bf16.gmra.mxu0 %v176
    %v311 = vpop.f32.mrf.mxu0
    %v312 = vadd.f32 0.0, %v311
    %v313 = vpop.f32.mrf.mxu0
    %v314 = vpop.f32.mrf.mxu0
    %v315 = vadd.f32 0.0, %v314
    %v316 = vpop.f32.mrf.mxu0
    %317 = vmatprep.mubr.bf16.mxu0 0
    %318 = vmatmul.mubr.bf16.gmra.mxu0 %v177
    %v319 = vpop.f32.mrf.mxu0
    %v320 = vadd.f32 0.0, %v319
    %v321 = vpop.f32.mrf.mxu0
    %v322 = vpop.f32.mrf.mxu0
    %v323 = vadd.f32 0.0, %v322
    %v324 = vpop.f32.mrf.mxu0
    %325 = vmatprep.mubr.bf16.mxu0 0
    %326 = vmatmul.mubr.bf16.gmra.mxu0 %v178
    %v327 = vpop.f32.mrf.mxu0
    %v328 = vadd.f32 0.0, %v327
    %v329 = vpop.f32.mrf.mxu0
    %v330 = vpop.f32.mrf.mxu0
    %v331 = vadd.f32 0.0, %v330
    %v332 = vpop.f32.mrf.mxu0
    %333 = vmatprep.mubr.bf16.mxu0 0
    %334 = vmatmul.mubr.bf16.gmra.mxu0 %v179
    %v335 = vpop.f32.mrf.mxu0
    %v336 = vadd.f32 0.0, %v335
    %v337 = vpop.f32.mrf.mxu0
    %v338 = vpop.f32.mrf.mxu0
    %v339 = vadd.f32 0.0, %v338
    %v340 = vpop.f32.mrf.mxu0
    %341 = vmatprep.mubr.bf16.mxu0 0
    %342 = vmatmul.mubr.bf16.gmra.mxu0 %v180
    %v343 = vpop.f32.mrf.mxu0
    %v344 = vadd.f32 0.0, %v343
    %v345 = vpop.f32.mrf.mxu0
    %v346 = vpop.f32.mrf.mxu0
    %v347 = vadd.f32 0.0, %v346
    %v348 = vpop.f32.mrf.mxu0
    %349 = vmatprep.mubr.bf16.mxu0 0
    %350 = vmatmul.mubr.bf16.gmra.mxu0 %v181
    %v351 = vpop.f32.mrf.mxu0
    %v352 = vadd.f32 0.0, %v351
    %v353 = vpop.f32.mrf.mxu0
    %v354 = vpop.f32.mrf.mxu0
    %v355 = vadd.f32 0.0, %v354
    %v356 = vpop.f32.mrf.mxu0
    %357 = vmatprep.mubr.bf16.mxu0 0
    %358 = vmatmul.mubr.bf16.gmra.mxu0 %v182
    %v359 = vpop.f32.mrf.mxu0
    %v360 = vadd.f32 0.0, %v359
    %v361 = vpop.f32.mrf.mxu0
    %v362 = vpop.f32.mrf.mxu0
    %v363 = vadd.f32 0.0, %v362
    %v364 = vpop.f32.mrf.mxu0
    %365 = vmatprep.mubr.bf16.mxu0 0
    %366 = vmatmul.mubr.bf16.gmra.mxu0 %v183
    %v367 = vpop.f32.mrf.mxu0
    %v368 = vadd.f32 0.0, %v367
    %v369 = vpop.f32.mrf.mxu0
    %v370 = vpop.f32.mrf.mxu0
    %v371 = vadd.f32 0.0, %v370
    %v372 = vpop.f32.mrf.mxu0
    %373 = vmatprep.mubr.bf16.mxu0 0
    %374 = vmatmul.mubr.bf16.gmra.mxu0 %v184
    %v375 = vpop.f32.mrf.mxu0
    %v376 = vadd.f32 0.0, %v375
    %v377 = vpop.f32.mrf.mxu0
    %v378 = vpop.f32.mrf.mxu0
    %v379 = vadd.f32 0.0, %v378
    %v380 = vpop.f32.mrf.mxu0
    %381 = vmatprep.mubr.bf16.mxu0 0
    %382 = vmatmul.mubr.bf16.gmra.mxu0 %v185
    %v383 = vpop.f32.mrf.mxu0
    %v384 = vadd.f32 0.0, %v383
    %v385 = vpop.f32.mrf.mxu0
    %v386 = vpop.f32.mrf.mxu0
    %v387 = vadd.f32 0.0, %v386
    %v388 = vpop.f32.mrf.mxu0
    %389 = vmatprep.mubr.bf16.mxu0 0
    %390 = vmatmul.mubr.bf16.gmra.mxu0 %v186
    %v391 = vpop.f32.mrf.mxu0
    %v392 = vadd.f32 0.0, %v391
    %v393 = vpop.f32.mrf.mxu0
    %v394 = vpop.f32.mrf.mxu0
    %v395 = vadd.f32 0.0, %v394
    %v396 = vpop.f32.mrf.mxu0
    %397 = vmatprep.mubr.bf16.mxu0 0
    %398 = vmatmul.mubr.bf16.gmra.mxu0 %v187
    %v399 = vpop.f32.mrf.mxu0
    %v400 = vadd.f32 0.0, %v399
    %v401 = vpop.f32.mrf.mxu0
    %v402 = vpop.f32.mrf.mxu0
    %v403 = vadd.f32 0.0, %v402
    %v404 = vpop.f32.mrf.mxu0
    %405 = vmatprep.mubr.bf16.mxu0 0
    %406 = vmatmul.mubr.bf16.gmra.mxu0 %v188
    %v407 = vpop.f32.mrf.mxu0
    %v408 = vadd.f32 0.0, %v407
    %v409 = vpop.f32.mrf.mxu0
    %v410 = vpop.f32.mrf.mxu0
    %v411 = vadd.f32 0.0, %v410
    %v412 = vpop.f32.mrf.mxu0
    %413 = vdwg.mxu0
    %v414 = vpack.c.bf16 %v291, %v288
    %v415 = vpack.c.bf16 %v299, %v296
    %v416 = vpack.c.bf16 %v307, %v304
    %v417 = vpack.c.bf16 %v315, %v312
    %v418 = vpack.c.bf16 %v323, %v320
    %v419 = vpack.c.bf16 %v331, %v328
    %v420 = vpack.c.bf16 %v339, %v336
    %v421 = vpack.c.bf16 %v347, %v344
    %v422 = vpack.c.bf16 %v355, %v352
    %v423 = vpack.c.bf16 %v363, %v360
    %v424 = vpack.c.bf16 %v371, %v368
    %v425 = vpack.c.bf16 %v379, %v376
    %v426 = vpack.c.bf16 %v387, %v384
    %v427 = vpack.c.bf16 %v395, %v392
    %v428 = vpack.c.bf16 %v403, %v400
    %v429 = vpack.c.bf16 %v411, %v408
    %v446 = vunpack.c.l.b16 %v414
    %v447 = vunpack.c.h.b16 %v414
    %v448 = vunpack.c.l.b16 %v415
    %v449 = vunpack.c.h.b16 %v415
    %v450 = vunpack.c.l.b16 %v416
    %v451 = vunpack.c.h.b16 %v416
    %v452 = vunpack.c.l.b16 %v417
    %v453 = vunpack.c.h.b16 %v417
    %v454 = vunpack.c.l.b16 %v418
    %v455 = vunpack.c.h.b16 %v418
    %v456 = vunpack.c.l.b16 %v419
    %v457 = vunpack.c.h.b16 %v419
    %v458 = vunpack.c.l.b16 %v420
    %v459 = vunpack.c.h.b16 %v420
    %v460 = vunpack.c.l.b16 %v421
    %v461 = vunpack.c.h.b16 %v421
    %v462 = vunpack.c.l.b16 %v422
    %v463 = vunpack.c.h.b16 %v422
    %v464 = vunpack.c.l.b16 %v423
    %v465 = vunpack.c.h.b16 %v423
    %v466 = vunpack.c.l.b16 %v424
    %v467 = vunpack.c.h.b16 %v424
    %v468 = vunpack.c.l.b16 %v425
    %v469 = vunpack.c.h.b16 %v425
    %v470 = vunpack.c.l.b16 %v426
    %v471 = vunpack.c.h.b16 %v426
    %v472 = vunpack.c.l.b16 %v427
    %v473 = vunpack.c.h.b16 %v427
    %v474 = vunpack.c.l.b16 %v428
    %v475 = vunpack.c.h.b16 %v428
    %v476 = vunpack.c.l.b16 %v429
    %v477 = vunpack.c.h.b16 %v429
    %v478 = vpack.c.b16 %v446, %v446
    %v479 = vpack.c.b16 %v447, %v447
    %v480 = vpack.c.b16 %v448, %v448
    %v481 = vpack.c.b16 %v449, %v449
    %v482 = vpack.c.b16 %v450, %v450
    %v483 = vpack.c.b16 %v451, %v451
    %v484 = vpack.c.b16 %v452, %v452
    %v485 = vpack.c.b16 %v453, %v453
    %v486 = vpack.c.b16 %v454, %v454
    %v487 = vpack.c.b16 %v455, %v455
    %v488 = vpack.c.b16 %v456, %v456
    %v489 = vpack.c.b16 %v457, %v457
    %v490 = vpack.c.b16 %v458, %v458
    %v491 = vpack.c.b16 %v459, %v459
    %v492 = vpack.c.b16 %v460, %v460
    %v493 = vpack.c.b16 %v461, %v461
    %v494 = vpack.c.b16 %v462, %v462
    %v495 = vpack.c.b16 %v463, %v463
    %v496 = vpack.c.b16 %v464, %v464
    %v497 = vpack.c.b16 %v465, %v465
    %v498 = vpack.c.b16 %v466, %v466
    %v499 = vpack.c.b16 %v467, %v467
    %v500 = vpack.c.b16 %v468, %v468
    %v501 = vpack.c.b16 %v469, %v469
    %v502 = vpack.c.b16 %v470, %v470
    %v503 = vpack.c.b16 %v471, %v471
    %v504 = vpack.c.b16 %v472, %v472
    %v505 = vpack.c.b16 %v473, %v473
    %v506 = vpack.c.b16 %v474, %v474
    %v507 = vpack.c.b16 %v475, %v475
    %v508 = vpack.c.b16 %v476, %v476
    %v509 = vpack.c.b16 %v477, %v477
    %542 = vst [vmem:[#allocation7] sm:$0xf] %v478
    %543 = vst [vmem:[#allocation7 + $0x4] sm:$0xf] %v479
    %544 = vst [vmem:[#allocation7 + $0x8] sm:$0xf] %v480
    %545 = vst [vmem:[#allocation7 + $0xc] sm:$0xf] %v481
    %546 = vst [vmem:[#allocation7 + $0x10] sm:$0xf] %v482
    %547 = vst [vmem:[#allocation7 + $0x14] sm:$0xf] %v483
    %548 = vst [vmem:[#allocation7 + $0x18] sm:$0xf] %v484
    %549 = vst [vmem:[#allocation7 + $0x1c] sm:$0xf] %v485
    %550 = vst [vmem:[#allocation7 + $0x20] sm:$0xf] %v486
    %551 = vst [vmem:[#allocation7 + $0x24] sm:$0xf] %v487
    %552 = vst [vmem:[#allocation7 + $0x28] sm:$0xf] %v488
    %553 = vst [vmem:[#allocation7 + $0x2c] sm:$0xf] %v489
    %554 = vst [vmem:[#allocation7 + $0x30] sm:$0xf] %v490
    %555 = vst [vmem:[#allocation7 + $0x34] sm:$0xf] %v491
    %556 = vst [vmem:[#allocation7 + $0x38] sm:$0xf] %v492
    %557 = vst [vmem:[#allocation7 + $0x3c] sm:$0xf] %v493
    %558 = vst [vmem:[#allocation7 + $0x40] sm:$0xf] %v494
    %559 = vst [vmem:[#allocation7 + $0x44] sm:$0xf] %v495
    %560 = vst [vmem:[#allocation7 + $0x48] sm:$0xf] %v496
    %561 = vst [vmem:[#allocation7 + $0x4c] sm:$0xf] %v497
    %562 = vst [vmem:[#allocation7 + $0x50] sm:$0xf] %v498
    %563 = vst [vmem:[#allocation7 + $0x54] sm:$0xf] %v499
    %564 = vst [vmem:[#allocation7 + $0x58] sm:$0xf] %v500
    %565 = vst [vmem:[#allocation7 + $0x5c] sm:$0xf] %v501
    %566 = vst [vmem:[#allocation7 + $0x60] sm:$0xf] %v502
    %567 = vst [vmem:[#allocation7 + $0x64] sm:$0xf] %v503
    %568 = vst [vmem:[#allocation7 + $0x68] sm:$0xf] %v504
    %569 = vst [vmem:[#allocation7 + $0x6c] sm:$0xf] %v505
    %570 = vst [vmem:[#allocation7 + $0x70] sm:$0xf] %v506
    %571 = vst [vmem:[#allocation7 + $0x74] sm:$0xf] %v507
    %572 = vst [vmem:[#allocation7 + $0x78] sm:$0xf] %v508
    %573 = vst [vmem:[#allocation7 + $0x7c] sm:$0xf] %v509
    %v574 = vunpack.c.h.b16 %v77
    %v575 = vunpack.c.h.b16 %v79
    %v576 = vunpack.c.h.b16 %v81
    %v577 = vunpack.c.h.b16 %v83
    %v578 = vunpack.c.h.b16 %v85
    %v579 = vunpack.c.h.b16 %v87
    %v580 = vunpack.c.h.b16 %v89
    %v581 = vunpack.c.h.b16 %v91
    %v582 = vunpack.c.h.b16 %v93
    %v583 = vunpack.c.h.b16 %v95
    %v584 = vunpack.c.h.b16 %v97
    %v585 = vunpack.c.h.b16 %v99
    %v586 = vunpack.c.h.b16 %v101
    %v587 = vunpack.c.h.b16 %v103
    %v588 = vunpack.c.h.b16 %v105
    %v589 = vunpack.c.h.b16 %v107
    %v590 = vpack.c.b16 %v575, %v574
    %v591 = vpack.c.b16 %v577, %v576
    %v592 = vpack.c.b16 %v579, %v578
    %v593 = vpack.c.b16 %v581, %v580
    %v594 = vpack.c.b16 %v583, %v582
    %v595 = vpack.c.b16 %v585, %v584
    %v596 = vpack.c.b16 %v587, %v586
    %v597 = vpack.c.b16 %v589, %v588
    %606 = vmatprep.subr.bf16.mxu0 0
    %607 = vmatpush1.bf16.msra.mxu0 %v597
    %608 = vmatprep.subr.bf16.mxu0 0
    %609 = vmatpush1.bf16.msra.mxu0 %v596
    %610 = vmatprep.subr.bf16.mxu0 0
    %611 = vmatpush1.bf16.msra.mxu0 %v595
    %612 = vmatprep.subr.bf16.mxu0 0
    %613 = vmatpush1.bf16.msra.mxu0 %v594
    %614 = vmatprep.subr.bf16.mxu0 0
    %615 = vmatpush1.bf16.msra.mxu0 %v593
    %616 = vmatprep.subr.bf16.mxu0 0
    %617 = vmatpush1.bf16.msra.mxu0 %v592
    %618 = vmatprep.subr.bf16.mxu0 0
    %619 = vmatpush1.bf16.msra.mxu0 %v591
    %620 = vmatprep.subr.bf16.mxu0 0
    %621 = vmatpush1.bf16.msra.mxu0 %v590
    %622 = vmatprep.subr.bf16.mxu0 0
    %623 = vmatpush2.bf16.msra.mxu0 0
    %624 = vmatprep.subr.bf16.mxu0 0
    %625 = vmatpush2.bf16.msra.mxu0 0
    %626 = vmatprep.subr.bf16.mxu0 0
    %627 = vmatpush2.bf16.msra.mxu0 0
    %628 = vmatprep.subr.bf16.mxu0 0
    %629 = vmatpush2.bf16.msra.mxu0 0
    %630 = vmatprep.subr.bf16.mxu0 0
    %631 = vmatpush2.bf16.msra.mxu0 0
    %632 = vmatprep.subr.bf16.mxu0 0
    %633 = vmatpush2.bf16.msra.mxu0 0
    %634 = vmatprep.subr.bf16.mxu0 0
    %635 = vmatpush2.bf16.msra.mxu0 0
    %636 = vmatprep.subr.bf16.mxu0 0
    %637 = vmatpush2.bf16.msra.mxu0 0
    %638 = vmatprep.mubr.bf16.mxu0 0
    %639 = vmatmul.mubr.bf16.gmra.mxu0 %v173
    %v640 = vpop.f32.mrf.mxu0
    %v641 = vadd.f32 0.0, %v640
    %v642 = vpop.f32.mrf.mxu0
    %v643 = vpop.f32.mrf.mxu0
    %v644 = vadd.f32 0.0, %v643
    %v645 = vpop.f32.mrf.mxu0
    %646 = vmatprep.mubr.bf16.mxu0 0
    %647 = vmatmul.mubr.bf16.gmra.mxu0 %v174
    %v648 = vpop.f32.mrf.mxu0
    %v649 = vadd.f32 0.0, %v648
    %v650 = vpop.f32.mrf.mxu0
    %v651 = vpop.f32.mrf.mxu0
    %v652 = vadd.f32 0.0, %v651
    %v653 = vpop.f32.mrf.mxu0
    %654 = vmatprep.mubr.bf16.mxu0 0
    %655 = vmatmul.mubr.bf16.gmra.mxu0 %v175
    %v656 = vpop.f32.mrf.mxu0
    %v657 = vadd.f32 0.0, %v656
    %v658 = vpop.f32.mrf.mxu0
    %v659 = vpop.f32.mrf.mxu0
    %v660 = vadd.f32 0.0, %v659
    %v661 = vpop.f32.mrf.mxu0
    %662 = vmatprep.mubr.bf16.mxu0 0
    %663 = vmatmul.mubr.bf16.gmra.mxu0 %v176
    %v664 = vpop.f32.mrf.mxu0
    %v665 = vadd.f32 0.0, %v664
    %v666 = vpop.f32.mrf.mxu0
    %v667 = vpop.f32.mrf.mxu0
    %v668 = vadd.f32 0.0, %v667
    %v669 = vpop.f32.mrf.mxu0
    %670 = vmatprep.mubr.bf16.mxu0 0
    %671 = vmatmul.mubr.bf16.gmra.mxu0 %v177
    %v672 = vpop.f32.mrf.mxu0
    %v673 = vadd.f32 0.0, %v672
    %v674 = vpop.f32.mrf.mxu0
    %v675 = vpop.f32.mrf.mxu0
    %v676 = vadd.f32 0.0, %v675
    %v677 = vpop.f32.mrf.mxu0
    %678 = vmatprep.mubr.bf16.mxu0 0
    %679 = vmatmul.mubr.bf16.gmra.mxu0 %v178
    %v680 = vpop.f32.mrf.mxu0
    %v681 = vadd.f32 0.0, %v680
    %v682 = vpop.f32.mrf.mxu0
    %v683 = vpop.f32.mrf.mxu0
    %v684 = vadd.f32 0.0, %v683
    %v685 = vpop.f32.mrf.mxu0
    %686 = vmatprep.mubr.bf16.mxu0 0
    %687 = vmatmul.mubr.bf16.gmra.mxu0 %v179
    %v688 = vpop.f32.mrf.mxu0
    %v689 = vadd.f32 0.0, %v688
    %v690 = vpop.f32.mrf.mxu0
    %v691 = vpop.f32.mrf.mxu0
    %v692 = vadd.f32 0.0, %v691
    %v693 = vpop.f32.mrf.mxu0
    %694 = vmatprep.mubr.bf16.mxu0 0
    %695 = vmatmul.mubr.bf16.gmra.mxu0 %v180
    %v696 = vpop.f32.mrf.mxu0
    %v697 = vadd.f32 0.0, %v696
    %v698 = vpop.f32.mrf.mxu0
    %v699 = vpop.f32.mrf.mxu0
    %v700 = vadd.f32 0.0, %v699
    %v701 = vpop.f32.mrf.mxu0
    %702 = vmatprep.mubr.bf16.mxu0 0
    %703 = vmatmul.mubr.bf16.gmra.mxu0 %v181
    %v704 = vpop.f32.mrf.mxu0
    %v705 = vadd.f32 0.0, %v704
    %v706 = vpop.f32.mrf.mxu0
    %v707 = vpop.f32.mrf.mxu0
    %v708 = vadd.f32 0.0, %v707
    %v709 = vpop.f32.mrf.mxu0
    %710 = vmatprep.mubr.bf16.mxu0 0
    %711 = vmatmul.mubr.bf16.gmra.mxu0 %v182
    %v712 = vpop.f32.mrf.mxu0
    %v713 = vadd.f32 0.0, %v712
    %v714 = vpop.f32.mrf.mxu0
    %v715 = vpop.f32.mrf.mxu0
    %v716 = vadd.f32 0.0, %v715
    %v717 = vpop.f32.mrf.mxu0
    %718 = vmatprep.mubr.bf16.mxu0 0
    %719 = vmatmul.mubr.bf16.gmra.mxu0 %v183
    %v720 = vpop.f32.mrf.mxu0
    %v721 = vadd.f32 0.0, %v720
    %v722 = vpop.f32.mrf.mxu0
    %v723 = vpop.f32.mrf.mxu0
    %v724 = vadd.f32 0.0, %v723
    %v725 = vpop.f32.mrf.mxu0
    %726 = vmatprep.mubr.bf16.mxu0 0
    %727 = vmatmul.mubr.bf16.gmra.mxu0 %v184
    %v728 = vpop.f32.mrf.mxu0
    %v729 = vadd.f32 0.0, %v728
    %v730 = vpop.f32.mrf.mxu0
    %v731 = vpop.f32.mrf.mxu0
    %v732 = vadd.f32 0.0, %v731
    %v733 = vpop.f32.mrf.mxu0
    %734 = vmatprep.mubr.bf16.mxu0 0
    %735 = vmatmul.mubr.bf16.gmra.mxu0 %v185
    %v736 = vpop.f32.mrf.mxu0
    %v737 = vadd.f32 0.0, %v736
    %v738 = vpop.f32.mrf.mxu0
    %v739 = vpop.f32.mrf.mxu0
    %v740 = vadd.f32 0.0, %v739
    %v741 = vpop.f32.mrf.mxu0
    %742 = vmatprep.mubr.bf16.mxu0 0
    %743 = vmatmul.mubr.bf16.gmra.mxu0 %v186
    %v744 = vpop.f32.mrf.mxu0
    %v745 = vadd.f32 0.0, %v744
    %v746 = vpop.f32.mrf.mxu0
    %v747 = vpop.f32.mrf.mxu0
    %v748 = vadd.f32 0.0, %v747
    %v749 = vpop.f32.mrf.mxu0
    %750 = vmatprep.mubr.bf16.mxu0 0
    %751 = vmatmul.mubr.bf16.gmra.mxu0 %v187
    %v752 = vpop.f32.mrf.mxu0
    %v753 = vadd.f32 0.0, %v752
    %v754 = vpop.f32.mrf.mxu0
    %v755 = vpop.f32.mrf.mxu0
    %v756 = vadd.f32 0.0, %v755
    %v757 = vpop.f32.mrf.mxu0
    %758 = vmatprep.mubr.bf16.mxu0 0
    %759 = vmatmul.mubr.bf16.gmra.mxu0 %v188
    %v760 = vpop.f32.mrf.mxu0
    %v761 = vadd.f32 0.0, %v760
    %v762 = vpop.f32.mrf.mxu0
    %v763 = vpop.f32.mrf.mxu0
    %v764 = vadd.f32 0.0, %v763
    %v765 = vpop.f32.mrf.mxu0
    %766 = vdwg.mxu0
    %v767 = vpack.c.bf16 %v644, %v641
    %v768 = vpack.c.bf16 %v652, %v649
    %v769 = vpack.c.bf16 %v660, %v657
    %v770 = vpack.c.bf16 %v668, %v665
    %v771 = vpack.c.bf16 %v676, %v673
    %v772 = vpack.c.bf16 %v684, %v681
    %v773 = vpack.c.bf16 %v692, %v689
    %v774 = vpack.c.bf16 %v700, %v697
    %v775 = vpack.c.bf16 %v708, %v705
    %v776 = vpack.c.bf16 %v716, %v713
    %v777 = vpack.c.bf16 %v724, %v721
    %v778 = vpack.c.bf16 %v732, %v729
    %v779 = vpack.c.bf16 %v740, %v737
    %v780 = vpack.c.bf16 %v748, %v745
    %v781 = vpack.c.bf16 %v756, %v753
    %v782 = vpack.c.bf16 %v764, %v761
    %v799 = vunpack.c.l.b16 %v767
    %v800 = vunpack.c.h.b16 %v767
    %v801 = vunpack.c.l.b16 %v768
    %v802 = vunpack.c.h.b16 %v768
    %v803 = vunpack.c.l.b16 %v769
    %v804 = vunpack.c.h.b16 %v769
    %v805 = vunpack.c.l.b16 %v770
    %v806 = vunpack.c.h.b16 %v770
    %v807 = vunpack.c.l.b16 %v771
    %v808 = vunpack.c.h.b16 %v771
    %v809 = vunpack.c.l.b16 %v772
    %v810 = vunpack.c.h.b16 %v772
    %v811 = vunpack.c.l.b16 %v773
    %v812 = vunpack.c.h.b16 %v773
    %v813 = vunpack.c.l.b16 %v774
    %v814 = vunpack.c.h.b16 %v774
    %v815 = vunpack.c.l.b16 %v775
    %v816 = vunpack.c.h.b16 %v775
    %v817 = vunpack.c.l.b16 %v776
    %v818 = vunpack.c.h.b16 %v776
    %v819 = vunpack.c.l.b16 %v777
    %v820 = vunpack.c.h.b16 %v777
    %v821 = vunpack.c.l.b16 %v778
    %v822 = vunpack.c.h.b16 %v778
    %v823 = vunpack.c.l.b16 %v779
    %v824 = vunpack.c.h.b16 %v779
    %v825 = vunpack.c.l.b16 %v780
    %v826 = vunpack.c.h.b16 %v780
    %v827 = vunpack.c.l.b16 %v781
    %v828 = vunpack.c.h.b16 %v781
    %v829 = vunpack.c.l.b16 %v782
    %v830 = vunpack.c.h.b16 %v782
    %v831 = vpack.c.b16 %v799, %v799
    %v832 = vpack.c.b16 %v800, %v800
    %v833 = vpack.c.b16 %v801, %v801
    %v834 = vpack.c.b16 %v802, %v802
    %v835 = vpack.c.b16 %v803, %v803
    %v836 = vpack.c.b16 %v804, %v804
    %v837 = vpack.c.b16 %v805, %v805
    %v838 = vpack.c.b16 %v806, %v806
    %v839 = vpack.c.b16 %v807, %v807
    %v840 = vpack.c.b16 %v808, %v808
    %v841 = vpack.c.b16 %v809, %v809
    %v842 = vpack.c.b16 %v810, %v810
    %v843 = vpack.c.b16 %v811, %v811
    %v844 = vpack.c.b16 %v812, %v812
    %v845 = vpack.c.b16 %v813, %v813
    %v846 = vpack.c.b16 %v814, %v814
    %v847 = vpack.c.b16 %v815, %v815
    %v848 = vpack.c.b16 %v816, %v816
    %v849 = vpack.c.b16 %v817, %v817
    %v850 = vpack.c.b16 %v818, %v818
    %v851 = vpack.c.b16 %v819, %v819
    %v852 = vpack.c.b16 %v820, %v820
    %v853 = vpack.c.b16 %v821, %v821
    %v854 = vpack.c.b16 %v822, %v822
    %v855 = vpack.c.b16 %v823, %v823
    %v856 = vpack.c.b16 %v824, %v824
    %v857 = vpack.c.b16 %v825, %v825
    %v858 = vpack.c.b16 %v826, %v826
    %v859 = vpack.c.b16 %v827, %v827
    %v860 = vpack.c.b16 %v828, %v828
    %v861 = vpack.c.b16 %v829, %v829
    %v862 = vpack.c.b16 %v830, %v830
    %895 = vst [vmem:[#allocation8] sm:$0xf] %v831
    %896 = vst [vmem:[#allocation8 + $0x4] sm:$0xf] %v832
    %897 = vst [vmem:[#allocation8 + $0x8] sm:$0xf] %v833
    %898 = vst [vmem:[#allocation8 + $0xc] sm:$0xf] %v834
    %899 = vst [vmem:[#allocation8 + $0x10] sm:$0xf] %v835
    %900 = vst [vmem:[#allocation8 + $0x14] sm:$0xf] %v836
    %901 = vst [vmem:[#allocation8 + $0x18] sm:$0xf] %v837
    %902 = vst [vmem:[#allocation8 + $0x1c] sm:$0xf] %v838
    %903 = vst [vmem:[#allocation8 + $0x20] sm:$0xf] %v839
    %904 = vst [vmem:[#allocation8 + $0x24] sm:$0xf] %v840
    %905 = vst [vmem:[#allocation8 + $0x28] sm:$0xf] %v841
    %906 = vst [vmem:[#allocation8 + $0x2c] sm:$0xf] %v842
    %907 = vst [vmem:[#allocation8 + $0x30] sm:$0xf] %v843
    %908 = vst [vmem:[#allocation8 + $0x34] sm:$0xf] %v844
    %909 = vst [vmem:[#allocation8 + $0x38] sm:$0xf] %v845
    %910 = vst [vmem:[#allocation8 + $0x3c] sm:$0xf] %v846
    %911 = vst [vmem:[#allocation8 + $0x40] sm:$0xf] %v847
    %912 = vst [vmem:[#allocation8 + $0x44] sm:$0xf] %v848
    %913 = vst [vmem:[#allocation8 + $0x48] sm:$0xf] %v849
    %914 = vst [vmem:[#allocation8 + $0x4c] sm:$0xf] %v850
    %915 = vst [vmem:[#allocation8 + $0x50] sm:$0xf] %v851
    %916 = vst [vmem:[#allocation8 + $0x54] sm:$0xf] %v852
    %917 = vst [vmem:[#allocation8 + $0x58] sm:$0xf] %v853
    %918 = vst [vmem:[#allocation8 + $0x5c] sm:$0xf] %v854
    %919 = vst [vmem:[#allocation8 + $0x60] sm:$0xf] %v855
    %920 = vst [vmem:[#allocation8 + $0x64] sm:$0xf] %v856
    %921 = vst [vmem:[#allocation8 + $0x68] sm:$0xf] %v857
    %922 = vst [vmem:[#allocation8 + $0x6c] sm:$0xf] %v858
    %923 = vst [vmem:[#allocation8 + $0x70] sm:$0xf] %v859
    %924 = vst [vmem:[#allocation8 + $0x74] sm:$0xf] %v860
    %925 = vst [vmem:[#allocation8 + $0x78] sm:$0xf] %v861
    %926 = vst [vmem:[#allocation8 + $0x7c] sm:$0xf] %v862
    %v943 = vunpack.c.l.b16 %v78
    %v944 = vunpack.c.l.b16 %v80
    %v945 = vunpack.c.l.b16 %v82
    %v946 = vunpack.c.l.b16 %v84
    %v947 = vunpack.c.l.b16 %v86
    %v948 = vunpack.c.l.b16 %v88
    %v949 = vunpack.c.l.b16 %v90
    %v950 = vunpack.c.l.b16 %v92
    %v951 = vunpack.c.l.b16 %v94
    %v952 = vunpack.c.l.b16 %v96
    %v953 = vunpack.c.l.b16 %v98
    %v954 = vunpack.c.l.b16 %v100
    %v955 = vunpack.c.l.b16 %v102
    %v956 = vunpack.c.l.b16 %v104
    %v957 = vunpack.c.l.b16 %v106
    %v958 = vunpack.c.l.b16 %v108
    %v959 = vpack.c.b16 %v944, %v943
    %v960 = vpack.c.b16 %v946, %v945
    %v961 = vpack.c.b16 %v948, %v947
    %v962 = vpack.c.b16 %v950, %v949
    %v963 = vpack.c.b16 %v952, %v951
    %v964 = vpack.c.b16 %v954, %v953
    %v965 = vpack.c.b16 %v956, %v955
    %v966 = vpack.c.b16 %v958, %v957
    %975 = vmatprep.subr.bf16.mxu0 0
    %976 = vmatpush1.bf16.msra.mxu0 %v966
    %977 = vmatprep.subr.bf16.mxu0 0
    %978 = vmatpush1.bf16.msra.mxu0 %v965
    %979 = vmatprep.subr.bf16.mxu0 0
    %980 = vmatpush1.bf16.msra.mxu0 %v964
    %981 = vmatprep.subr.bf16.mxu0 0
    %982 = vmatpush1.bf16.msra.mxu0 %v963
    %983 = vmatprep.subr.bf16.mxu0 0
    %984 = vmatpush1.bf16.msra.mxu0 %v962
    %985 = vmatprep.subr.bf16.mxu0 0
    %986 = vmatpush1.bf16.msra.mxu0 %v961
    %987 = vmatprep.subr.bf16.mxu0 0
    %988 = vmatpush1.bf16.msra.mxu0 %v960
    %989 = vmatprep.subr.bf16.mxu0 0
    %990 = vmatpush1.bf16.msra.mxu0 %v959
    %991 = vmatprep.subr.bf16.mxu0 0
    %992 = vmatpush2.bf16.msra.mxu0 0
    %993 = vmatprep.subr.bf16.mxu0 0
    %994 = vmatpush2.bf16.msra.mxu0 0
    %995 = vmatprep.subr.bf16.mxu0 0
    %996 = vmatpush2.bf16.msra.mxu0 0
    %997 = vmatprep.subr.bf16.mxu0 0
    %998 = vmatpush2.bf16.msra.mxu0 0
    %999 = vmatprep.subr.bf16.mxu0 0
    %1000 = vmatpush2.bf16.msra.mxu0 0
    %1001 = vmatprep.subr.bf16.mxu0 0
    %1002 = vmatpush2.bf16.msra.mxu0 0
    %1003 = vmatprep.subr.bf16.mxu0 0
    %1004 = vmatpush2.bf16.msra.mxu0 0
    %1005 = vmatprep.subr.bf16.mxu0 0
    %1006 = vmatpush2.bf16.msra.mxu0 0
    %1007 = vmatprep.mubr.bf16.mxu0 0
    %1008 = vmatmul.mubr.bf16.gmra.mxu0 %v173
    %v1009 = vpop.f32.mrf.mxu0
    %v1010 = vadd.f32 0.0, %v1009
    %v1011 = vpop.f32.mrf.mxu0
    %v1012 = vpop.f32.mrf.mxu0
    %v1013 = vadd.f32 0.0, %v1012
    %v1014 = vpop.f32.mrf.mxu0
    %1015 = vmatprep.mubr.bf16.mxu0 0
    %1016 = vmatmul.mubr.bf16.gmra.mxu0 %v174
    %v1017 = vpop.f32.mrf.mxu0
    %v1018 = vadd.f32 0.0, %v1017
    %v1019 = vpop.f32.mrf.mxu0
    %v1020 = vpop.f32.mrf.mxu0
    %v1021 = vadd.f32 0.0, %v1020
    %v1022 = vpop.f32.mrf.mxu0
    %1023 = vmatprep.mubr.bf16.mxu0 0
    %1024 = vmatmul.mubr.bf16.gmra.mxu0 %v175
    %v1025 = vpop.f32.mrf.mxu0
    %v1026 = vadd.f32 0.0, %v1025
    %v1027 = vpop.f32.mrf.mxu0
    %v1028 = vpop.f32.mrf.mxu0
    %v1029 = vadd.f32 0.0, %v1028
    %v1030 = vpop.f32.mrf.mxu0
    %1031 = vmatprep.mubr.bf16.mxu0 0
    %1032 = vmatmul.mubr.bf16.gmra.mxu0 %v176
    %v1033 = vpop.f32.mrf.mxu0
    %v1034 = vadd.f32 0.0, %v1033
    %v1035 = vpop.f32.mrf.mxu0
    %v1036 = vpop.f32.mrf.mxu0
    %v1037 = vadd.f32 0.0, %v1036
    %v1038 = vpop.f32.mrf.mxu0
    %1039 = vmatprep.mubr.bf16.mxu0 0
    %1040 = vmatmul.mubr.bf16.gmra.mxu0 %v177
    %v1041 = vpop.f32.mrf.mxu0
    %v1042 = vadd.f32 0.0, %v1041
    %v1043 = vpop.f32.mrf.mxu0
    %v1044 = vpop.f32.mrf.mxu0
    %v1045 = vadd.f32 0.0, %v1044
    %v1046 = vpop.f32.mrf.mxu0
    %1047 = vmatprep.mubr.bf16.mxu0 0
    %1048 = vmatmul.mubr.bf16.gmra.mxu0 %v178
    %v1049 = vpop.f32.mrf.mxu0
    %v1050 = vadd.f32 0.0, %v1049
    %v1051 = vpop.f32.mrf.mxu0
    %v1052 = vpop.f32.mrf.mxu0
    %v1053 = vadd.f32 0.0, %v1052
    %v1054 = vpop.f32.mrf.mxu0
    %1055 = vmatprep.mubr.bf16.mxu0 0
    %1056 = vmatmul.mubr.bf16.gmra.mxu0 %v179
    %v1057 = vpop.f32.mrf.mxu0
    %v1058 = vadd.f32 0.0, %v1057
    %v1059 = vpop.f32.mrf.mxu0
    %v1060 = vpop.f32.mrf.mxu0
    %v1061 = vadd.f32 0.0, %v1060
    %v1062 = vpop.f32.mrf.mxu0
    %1063 = vmatprep.mubr.bf16.mxu0 0
    %1064 = vmatmul.mubr.bf16.gmra.mxu0 %v180
    %v1065 = vpop.f32.mrf.mxu0
    %v1066 = vadd.f32 0.0, %v1065
    %v1067 = vpop.f32.mrf.mxu0
    %v1068 = vpop.f32.mrf.mxu0
    %v1069 = vadd.f32 0.0, %v1068
    %v1070 = vpop.f32.mrf.mxu0
    %1071 = vmatprep.mubr.bf16.mxu0 0
    %1072 = vmatmul.mubr.bf16.gmra.mxu0 %v181
    %v1073 = vpop.f32.mrf.mxu0
    %v1074 = vadd.f32 0.0, %v1073
    %v1075 = vpop.f32.mrf.mxu0
    %v1076 = vpop.f32.mrf.mxu0
    %v1077 = vadd.f32 0.0, %v1076
    %v1078 = vpop.f32.mrf.mxu0
    %1079 = vmatprep.mubr.bf16.mxu0 0
    %1080 = vmatmul.mubr.bf16.gmra.mxu0 %v182
    %v1081 = vpop.f32.mrf.mxu0
    %v1082 = vadd.f32 0.0, %v1081
    %v1083 = vpop.f32.mrf.mxu0
    %v1084 = vpop.f32.mrf.mxu0
    %v1085 = vadd.f32 0.0, %v1084
    %v1086 = vpop.f32.mrf.mxu0
    %1087 = vmatprep.mubr.bf16.mxu0 0
    %1088 = vmatmul.mubr.bf16.gmra.mxu0 %v183
    %v1089 = vpop.f32.mrf.mxu0
    %v1090 = vadd.f32 0.0, %v1089
    %v1091 = vpop.f32.mrf.mxu0
    %v1092 = vpop.f32.mrf.mxu0
    %v1093 = vadd.f32 0.0, %v1092
    %v1094 = vpop.f32.mrf.mxu0
    %1095 = vmatprep.mubr.bf16.mxu0 0
    %1096 = vmatmul.mubr.bf16.gmra.mxu0 %v184
    %v1097 = vpop.f32.mrf.mxu0
    %v1098 = vadd.f32 0.0, %v1097
    %v1099 = vpop.f32.mrf.mxu0
    %v1100 = vpop.f32.mrf.mxu0
    %v1101 = vadd.f32 0.0, %v1100
    %v1102 = vpop.f32.mrf.mxu0
    %1103 = vmatprep.mubr.bf16.mxu0 0
    %1104 = vmatmul.mubr.bf16.gmra.mxu0 %v185
    %v1105 = vpop.f32.mrf.mxu0
    %v1106 = vadd.f32 0.0, %v1105
    %v1107 = vpop.f32.mrf.mxu0
    %v1108 = vpop.f32.mrf.mxu0
    %v1109 = vadd.f32 0.0, %v1108
    %v1110 = vpop.f32.mrf.mxu0
    %1111 = vmatprep.mubr.bf16.mxu0 0
    %1112 = vmatmul.mubr.bf16.gmra.mxu0 %v186
    %v1113 = vpop.f32.mrf.mxu0
    %v1114 = vadd.f32 0.0, %v1113
    %v1115 = vpop.f32.mrf.mxu0
    %v1116 = vpop.f32.mrf.mxu0
    %v1117 = vadd.f32 0.0, %v1116
    %v1118 = vpop.f32.mrf.mxu0
    %1119 = vmatprep.mubr.bf16.mxu0 0
    %1120 = vmatmul.mubr.bf16.gmra.mxu0 %v187
    %v1121 = vpop.f32.mrf.mxu0
    %v1122 = vadd.f32 0.0, %v1121
    %v1123 = vpop.f32.mrf.mxu0
    %v1124 = vpop.f32.mrf.mxu0
    %v1125 = vadd.f32 0.0, %v1124
    %v1126 = vpop.f32.mrf.mxu0
    %1127 = vmatprep.mubr.bf16.mxu0 0
    %1128 = vmatmul.mubr.bf16.gmra.mxu0 %v188
    %v1129 = vpop.f32.mrf.mxu0
    %v1130 = vadd.f32 0.0, %v1129
    %v1131 = vpop.f32.mrf.mxu0
    %v1132 = vpop.f32.mrf.mxu0
    %v1133 = vadd.f32 0.0, %v1132
    %v1134 = vpop.f32.mrf.mxu0
    %1135 = vdwg.mxu0
    %v1136 = vpack.c.bf16 %v1013, %v1010
    %v1137 = vpack.c.bf16 %v1021, %v1018
    %v1138 = vpack.c.bf16 %v1029, %v1026
    %v1139 = vpack.c.bf16 %v1037, %v1034
    %v1140 = vpack.c.bf16 %v1045, %v1042
    %v1141 = vpack.c.bf16 %v1053, %v1050
    %v1142 = vpack.c.bf16 %v1061, %v1058
    %v1143 = vpack.c.bf16 %v1069, %v1066
    %v1144 = vpack.c.bf16 %v1077, %v1074
    %v1145 = vpack.c.bf16 %v1085, %v1082
    %v1146 = vpack.c.bf16 %v1093, %v1090
    %v1147 = vpack.c.bf16 %v1101, %v1098
    %v1148 = vpack.c.bf16 %v1109, %v1106
    %v1149 = vpack.c.bf16 %v1117, %v1114
    %v1150 = vpack.c.bf16 %v1125, %v1122
    %v1151 = vpack.c.bf16 %v1133, %v1130
    %v1168 = vunpack.c.l.b16 %v1136
    %v1169 = vunpack.c.h.b16 %v1136
    %v1170 = vunpack.c.l.b16 %v1137
    %v1171 = vunpack.c.h.b16 %v1137
    %v1172 = vunpack.c.l.b16 %v1138
    %v1173 = vunpack.c.h.b16 %v1138
    %v1174 = vunpack.c.l.b16 %v1139
    %v1175 = vunpack.c.h.b16 %v1139
    %v1176 = vunpack.c.l.b16 %v1140
    %v1177 = vunpack.c.h.b16 %v1140
    %v1178 = vunpack.c.l.b16 %v1141
    %v1179 = vunpack.c.h.b16 %v1141
    %v1180 = vunpack.c.l.b16 %v1142
    %v1181 = vunpack.c.h.b16 %v1142
    %v1182 = vunpack.c.l.b16 %v1143
    %v1183 = vunpack.c.h.b16 %v1143
    %v1184 = vunpack.c.l.b16 %v1144
    %v1185 = vunpack.c.h.b16 %v1144
    %v1186 = vunpack.c.l.b16 %v1145
    %v1187 = vunpack.c.h.b16 %v1145
    %v1188 = vunpack.c.l.b16 %v1146
    %v1189 = vunpack.c.h.b16 %v1146
    %v1190 = vunpack.c.l.b16 %v1147
    %v1191 = vunpack.c.h.b16 %v1147
    %v1192 = vunpack.c.l.b16 %v1148
    %v1193 = vunpack.c.h.b16 %v1148
    %v1194 = vunpack.c.l.b16 %v1149
    %v1195 = vunpack.c.h.b16 %v1149
    %v1196 = vunpack.c.l.b16 %v1150
    %v1197 = vunpack.c.h.b16 %v1150
    %v1198 = vunpack.c.l.b16 %v1151
    %v1199 = vunpack.c.h.b16 %v1151
    %v1200 = vpack.c.b16 %v1168, %v1168
    %v1201 = vpack.c.b16 %v1169, %v1169
    %v1202 = vpack.c.b16 %v1170, %v1170
    %v1203 = vpack.c.b16 %v1171, %v1171
    %v1204 = vpack.c.b16 %v1172, %v1172
    %v1205 = vpack.c.b16 %v1173, %v1173
    %v1206 = vpack.c.b16 %v1174, %v1174
    %v1207 = vpack.c.b16 %v1175, %v1175
    %v1208 = vpack.c.b16 %v1176, %v1176
    %v1209 = vpack.c.b16 %v1177, %v1177
    %v1210 = vpack.c.b16 %v1178, %v1178
    %v1211 = vpack.c.b16 %v1179, %v1179
    %v1212 = vpack.c.b16 %v1180, %v1180
    %v1213 = vpack.c.b16 %v1181, %v1181
    %v1214 = vpack.c.b16 %v1182, %v1182
    %v1215 = vpack.c.b16 %v1183, %v1183
    %v1216 = vpack.c.b16 %v1184, %v1184
    %v1217 = vpack.c.b16 %v1185, %v1185
    %v1218 = vpack.c.b16 %v1186, %v1186
    %v1219 = vpack.c.b16 %v1187, %v1187
    %v1220 = vpack.c.b16 %v1188, %v1188
    %v1221 = vpack.c.b16 %v1189, %v1189
    %v1222 = vpack.c.b16 %v1190, %v1190
    %v1223 = vpack.c.b16 %v1191, %v1191
    %v1224 = vpack.c.b16 %v1192, %v1192
    %v1225 = vpack.c.b16 %v1193, %v1193
    %v1226 = vpack.c.b16 %v1194, %v1194
    %v1227 = vpack.c.b16 %v1195, %v1195
    %v1228 = vpack.c.b16 %v1196, %v1196
    %v1229 = vpack.c.b16 %v1197, %v1197
    %v1230 = vpack.c.b16 %v1198, %v1198
    %v1231 = vpack.c.b16 %v1199, %v1199
    %1264 = vst [vmem:[#allocation10] sm:$0xf] %v1200
    %1265 = vst [vmem:[#allocation10 + $0x4] sm:$0xf] %v1201
    %1266 = vst [vmem:[#allocation10 + $0x8] sm:$0xf] %v1202
    %1267 = vst [vmem:[#allocation10 + $0xc] sm:$0xf] %v1203
    %1268 = vst [vmem:[#allocation10 + $0x10] sm:$0xf] %v1204
    %1269 = vst [vmem:[#allocation10 + $0x14] sm:$0xf] %v1205
    %1270 = vst [vmem:[#allocation10 + $0x18] sm:$0xf] %v1206
    %1271 = vst [vmem:[#allocation10 + $0x1c] sm:$0xf] %v1207
    %1272 = vst [vmem:[#allocation10 + $0x20] sm:$0xf] %v1208
    %1273 = vst [vmem:[#allocation10 + $0x24] sm:$0xf] %v1209
    %1274 = vst [vmem:[#allocation10 + $0x28] sm:$0xf] %v1210
    %1275 = vst [vmem:[#allocation10 + $0x2c] sm:$0xf] %v1211
    %1276 = vst [vmem:[#allocation10 + $0x30] sm:$0xf] %v1212
    %1277 = vst [vmem:[#allocation10 + $0x34] sm:$0xf] %v1213
    %1278 = vst [vmem:[#allocation10 + $0x38] sm:$0xf] %v1214
    %1279 = vst [vmem:[#allocation10 + $0x3c] sm:$0xf] %v1215
    %1280 = vst [vmem:[#allocation10 + $0x40] sm:$0xf] %v1216
    %1281 = vst [vmem:[#allocation10 + $0x44] sm:$0xf] %v1217
    %1282 = vst [vmem:[#allocation10 + $0x48] sm:$0xf] %v1218
    %1283 = vst [vmem:[#allocation10 + $0x4c] sm:$0xf] %v1219
    %1284 = vst [vmem:[#allocation10 + $0x50] sm:$0xf] %v1220
    %1285 = vst [vmem:[#allocation10 + $0x54] sm:$0xf] %v1221
    %1286 = vst [vmem:[#allocation10 + $0x58] sm:$0xf] %v1222
    %1287 = vst [vmem:[#allocation10 + $0x5c] sm:$0xf] %v1223
    %1288 = vst [vmem:[#allocation10 + $0x60] sm:$0xf] %v1224
    %1289 = vst [vmem:[#allocation10 + $0x64] sm:$0xf] %v1225
    %1290 = vst [vmem:[#allocation10 + $0x68] sm:$0xf] %v1226
    %1291 = vst [vmem:[#allocation10 + $0x6c] sm:$0xf] %v1227
    %1292 = vst [vmem:[#allocation10 + $0x70] sm:$0xf] %v1228
    %1293 = vst [vmem:[#allocation10 + $0x74] sm:$0xf] %v1229
    %1294 = vst [vmem:[#allocation10 + $0x78] sm:$0xf] %v1230
    %1295 = vst [vmem:[#allocation10 + $0x7c] sm:$0xf] %v1231
    // Predicated region
    $region18: #{tpu_custom_call.1} parent=1 // pred_check
      _
    $region19: #{tpu_custom_call.1} parent=1 // pred_check_branch
      %1297 = sbr.rel (0) target = $region21
    $region20: #{tpu_custom_call.1} parent=1 // pred_region
      %s1299 = ssub.s32 2048, 2048
      %1300 = vsyncadd [#allocation4], %s1299
      %s1301 = sshll.u32 [#allocation7], 4
      %s1302 = int_to_ptr.vmem [resolvable:$true] %s1301
      %1307 = dma.vmem_to_hbm [thread:$0]  %s1302, 2048, %s2, [#allocation4], 64, 64, 4
    $region21: #{tpu_custom_call.1} parent=1 // pred_fallthru
      _
    // Predicated region
    $region22: #{tpu_custom_call.1} parent=1 // pred_check
      _
    $region23: #{tpu_custom_call.1} parent=1 // pred_check_branch
      %1309 = sbr.rel (0) target = $region25
    $region24: #{tpu_custom_call.1} parent=1 // pred_region
      %s1311 = ssub.s32 2048, 2048
      %1312 = vsyncadd [#allocation9], %s1311
      %s1313 = sshll.u32 [#allocation8], 4
      %s1314 = int_to_ptr.vmem [resolvable:$true] %s1313
      %1319 = dma.vmem_to_hbm [thread:$0]  %s1314, 2048, %s3, [#allocation9], 64, 64, 4
    $region25: #{tpu_custom_call.1} parent=1 // pred_fallthru
      _
    // Predicated region
    $region26: #{tpu_custom_call.1} parent=1 // pred_check
      _
    $region27: #{tpu_custom_call.1} parent=1 // pred_check_branch
      %1321 = sbr.rel (0) target = $region29
    $region28: #{tpu_custom_call.1} parent=1 // pred_region
      %s1323 = ssub.s32 2048, 2048
      %1324 = vsyncadd [#allocation9], %s1323
      %s1325 = sshll.u32 [#allocation10], 4
      %s1326 = int_to_ptr.vmem [resolvable:$true] %s1325
      %1331 = dma.vmem_to_hbm [thread:$0]  %s1326, 2048, %s4, [#allocation9], 64, 64, 4
    $region29: #{tpu_custom_call.1} parent=1 // pred_fallthru
      _
    // Predicated region
    $region30: #{tpu_custom_call.1} parent=1 // pred_check
      _
    $region31: #{tpu_custom_call.1} parent=1 // pred_check_branch
      %1333 = sbr.rel (0) target = $region33
    $region32: #{tpu_custom_call.1} parent=1 // pred_region
      %1334 = dma.done [#allocation4], 2048
    $region33: #{tpu_custom_call.1} parent=1 // pred_fallthru
      _
    // Predicated region
    $region34: #{tpu_custom_call.1} parent=1 // pred_check
      _
    $region35: #{tpu_custom_call.1} parent=1 // pred_check_branch
      %1336 = sbr.rel (0) target = $region37
    $region36: #{tpu_custom_call.1} parent=1 // pred_region
      %1337 = dma.done [#allocation9], 2048
    $region37: #{tpu_custom_call.1} parent=1 // pred_fallthru
      _
    // Predicated region
    $region38: #{tpu_custom_call.1} parent=1 // pred_check
      _
    $region39: #{tpu_custom_call.1} parent=1 // pred_check_branch
      %1339 = sbr.rel (0) target = $region41
    $region40: #{tpu_custom_call.1} parent=1 // pred_region
      %1340 = dma.done [#allocation9], 2048
    $region41: #{tpu_custom_call.1} parent=1 // pred_fallthru
      _
    %1341 = vsyncpa [#allocation3], 1
    %1342 = vsyncpa [#allocation6], 1
    %1343 = vsyncpa [#allocation4], 1
    %1344 = vsyncpa [#allocation9], 1

</llo_original>
